<compile_context>
chip_gen: v7x
topology: tpu7x:2x2x1
jax: 0.10.0
libtpu: 0.0.40
codegen_flags: <defaults>
</compile_context>

<pallas_src>
import math
import functools

import jax
import jax.numpy as jnp
from jax import lax
from jax.experimental import pallas as pl
from jax.experimental.pallas import tpu as pltpu

_SQRT1_2 = 1.0 / math.sqrt(2.0)


def _gelu_f32(h, approximate):
    if approximate:
        # tanh form routes the transcendental to the EUP slot (cheaper), but
        # does not bit-match torch's default erf GELU.
        return jax.nn.gelu(h, approximate=True)
    return 0.5 * h * (1.0 + lax.erf(h * _SQRT1_2))


# ---------------------------------------------------------------------------
# Kernel bodies
# ---------------------------------------------------------------------------
def _ff_kernel_resident(x_ref, w1_ref, w2_ref, o_ref, *, approximate_gelu):
    # x_ref : (tb, I)     batch tile
    # w1_ref: (I, H)      full weight, resident in VMEM (single-buffered)
    # w2_ref: (H, Opad)   full weight, resident in VMEM (single-buffered)
    # o_ref : (tb, Opad)  lane-dense output tile
    h = jnp.dot(x_ref[...], w1_ref[...], preferred_element_type=jnp.float32)
    h = _gelu_f32(h, approximate_gelu)
    out = jnp.dot(h.astype(w2_ref.dtype), w2_ref[...],
                  preferred_element_type=jnp.float32)
    o_ref[...] = out.astype(o_ref.dtype)


def _ff_kernel_htiled(x_ref, w1_ref, w2_ref, o_ref, acc_ref, *,
                      approximate_gelu):
    # Weight-streaming variant: grid=(B/tb, H/th); accumulate over H tiles.
    # x_ref : (tb, I), w1_ref: (I, th), w2_ref: (th, Opad)
    # o_ref : (tb, Opad), acc_ref: (tb, Opad) f32 scratch
    hk = pl.program_id(1)

    @pl.when(hk == 0)
    def _():
        acc_ref[...] = jnp.zeros_like(acc_ref)

    h = jnp.dot(x_ref[...], w1_ref[...], preferred_element_type=jnp.float32)
    h = _gelu_f32(h, approximate_gelu)     # elementwise -> safe to tile H
    acc_ref[...] += jnp.dot(h.astype(w2_ref.dtype), w2_ref[...],
                            preferred_element_type=jnp.float32)

    @pl.when(hk == pl.num_programs(1) - 1)
    def _():
        o_ref[...] = acc_ref[...].astype(o_ref.dtype)


# ---------------------------------------------------------------------------
# Wrapper
# ---------------------------------------------------------------------------
def _round_up(v, m):
    return ((v + m - 1) // m) * m


@functools.partial(
    jax.jit,
    static_argnames=("block_b", "hidden_block", "mxu_dtype",
                     "approximate_gelu", "vmem_budget_bytes"))
def ff_forward(x, w1s, w2s, block_b=None, hidden_block=None, mxu_dtype=None,
               approximate_gelu=False, vmem_budget_bytes=56 * 1024 * 1024):
    """out = gelu(x @ w1s) @ w2s, matching PyTorch FF.forward."""
    B, I = x.shape
    I2, H = w1s.shape
    H2, O = w2s.shape
    assert I == I2 and H == H2, "weight shapes inconsistent with x"

    out_dtype = x.dtype
    compute_dtype = jnp.dtype(mxu_dtype) if mxu_dtype is not None else jnp.dtype(x.dtype)
    wbytes = compute_dtype.itemsize
    obytes = jnp.dtype(out_dtype).itemsize

    # ----- tile selection --------------------------------------------------
    if block_b is None:
        # MXU-sized batch tile; small batches just get rounded up to sublanes.
        block_b = 256 if B >= 256 else max(8, _round_up(B, 8))
    B_pad = _round_up(B, block_b)
    # Lane-dense output: pad the output feature dim to a multiple of 128.
    O_pad = _round_up(max(O, 128), 128)

    # VMEM estimate (bytes) for the fully weight-resident strategy:
    #   weights single-buffered + x/out tiles double-buffered + f32 temps.
    resident_est = ((I * H + H * O_pad) * wbytes
                    + 2 * block_b * I * wbytes
                    + 2 * block_b * O_pad * obytes
                    + block_b * H * 4
                    + block_b * O_pad * 4)

    use_h_tiling = hidden_block is not None
    if not use_h_tiling and resident_est > vmem_budget_bytes:
        use_h_tiling = True

    H_pad = H
    if use_h_tiling:
        if hidden_block is None:
            hidden_block = 128
            for cand in (1024, 512, 256, 128):
                est = (2 * (I * cand + cand * O_pad) * wbytes  # streamed, 2 bufs
                       + 2 * block_b * I * wbytes
                       + 2 * block_b * O_pad * obytes
                       + block_b * cand * 4
                       + block_b * O_pad * 4)
                if est <= vmem_budget_bytes:
                    hidden_block = cand
                    break
            hidden_block = min(hidden_block, _round_up(H, 128))
        H_pad = _round_up(H, hidden_block)

    # ----- pad / cast operands (zero padding is numerically inert) ---------
    xp = x if B_pad == B else jnp.pad(x, ((0, B_pad - B), (0, 0)))
    w1p, w2p = w1s, w2s
    if H_pad != H:
        w1p = jnp.pad(w1p, ((0, 0), (0, H_pad - H)))
        w2p = jnp.pad(w2p, ((0, H_pad - H), (0, 0)))
    if O_pad != O:
        w2p = jnp.pad(w2p, ((0, 0), (0, O_pad - O)))
    if mxu_dtype is not None:
        xp = xp.astype(compute_dtype)
        w1p = w1p.astype(compute_dtype)
        w2p = w2p.astype(compute_dtype)

    cparams = pltpu.CompilerParams(
        dimension_semantics=("parallel",) if not use_h_tiling
        else ("parallel", "arbitrary"),
        vmem_limit_bytes=vmem_budget_bytes,
    )

    if not use_h_tiling:
        kernel = functools.partial(_ff_kernel_resident,
                                   approximate_gelu=approximate_gelu)
        out = pl.pallas_call(
            kernel,
            out_shape=jax.ShapeDtypeStruct((B_pad, O_pad), out_dtype),
            grid_spec=pltpu.PrefetchScalarGridSpec(
                num_scalar_prefetch=0,
                grid=(B_pad // block_b,),
                in_specs=[
                    pl.BlockSpec((block_b, I), lambda b: (b, 0)),
                    # Constant-index weights: single-buffered.
                    pl.BlockSpec((I, H_pad), lambda b: (0, 0),
                                 pipeline_mode=pl.Buffered(1)),
                    pl.BlockSpec((H_pad, O_pad), lambda b: (0, 0),
                                 pipeline_mode=pl.Buffered(1)),
                ],
                out_specs=pl.BlockSpec((block_b, O_pad), lambda b: (b, 0)),
            ),
            compiler_params=cparams,
        )(xp, w1p, w2p)
    else:
        kernel = functools.partial(_ff_kernel_htiled,
                                   approximate_gelu=approximate_gelu)
        out = pl.pallas_call(
            kernel,
            out_shape=jax.ShapeDtypeStruct((B_pad, O_pad), out_dtype),
            grid_spec=pltpu.PrefetchScalarGridSpec(
                num_scalar_prefetch=0,
                grid=(B_pad // block_b, H_pad // hidden_block),
                in_specs=[
                    pl.BlockSpec((block_b, I), lambda b, h: (b, 0)),
                    pl.BlockSpec((I, hidden_block), lambda b, h: (0, h)),
                    pl.BlockSpec((hidden_block, O_pad), lambda b, h: (h, 0)),
                ],
                out_specs=pl.BlockSpec((block_b, O_pad), lambda b, h: (b, 0)),
                scratch_shapes=[pltpu.VMEM((block_b, O_pad), jnp.float32)],
            ),
            compiler_params=cparams,
        )(xp, w1p, w2p)

    return out[:B, :O]


def ff_reference(x, w1s, w2s):
    h = x @ w1s
    h = 0.5 * h * (1.0 + lax.erf(h * _SQRT1_2))
    return h @ w2s


if __name__ == "__main__":
    key = jax.random.PRNGKey(0)

    # --- test 1: toy module-consistent shapes, f32, weight-resident path ---
    batch, input_width, hidden_width, output_width = 8, 32, 64, 32
    kx, k1, k2, key = jax.random.split(key, 4)
    l1 = 1.0 / math.sqrt(input_width)
    l2 = 1.0 / math.sqrt(hidden_width)
    w1s = jax.random.uniform(k1, (input_width, hidden_width), jnp.float32, -l1, l1)
    w2s = jax.random.uniform(k2, (hidden_width, output_width), jnp.float32, -l2, l2)
    x = jax.random.normal(kx, (batch, input_width), jnp.float32)

    out = jax.block_until_ready(ff_forward(x, w1s, w2s))
    ref = ff_reference(x, w1s, w2s)
    assert out.shape == (batch, output_width), out.shape
    assert jnp.allclose(out, ref, atol=1e-5, rtol=1e-5), \
        f"max abs err {jnp.max(jnp.abs(out - ref))}"

    # --- test 2: hidden-dim-tiled (weight-streaming) path, f32 -------------
    b2, i2, h2, o2 = 16, 128, 256, 128
    kx, k1, k2, key = jax.random.split(key, 4)
    w1b = jax.random.uniform(k1, (i2, h2), jnp.float32,
                             -1.0 / math.sqrt(i2), 1.0 / math.sqrt(i2))
    w2b = jax.random.uniform(k2, (h2, o2), jnp.float32,
                             -1.0 / math.sqrt(h2), 1.0 / math.sqrt(h2))
    xb = jax.random.normal(kx, (b2, i2), jnp.float32)
    out2 = jax.block_until_ready(ff_forward(xb, w1b, w2b, hidden_block=128))
    ref2 = ff_reference(xb, w1b, w2b)
    assert out2.shape == (b2, o2), out2.shape
    assert jnp.allclose(out2, ref2, atol=2e-3, rtol=2e-3), \
        f"max abs err {jnp.max(jnp.abs(out2 - ref2))}"

    # --- test 3: bf16 MXU inputs (v6e/v7x fast path), loose tolerance ------
    out3 = jax.block_until_ready(ff_forward(x, w1s, w2s, mxu_dtype=jnp.bfloat16))
    assert out3.shape == (batch, output_width), out3.shape
    assert jnp.allclose(out3, ref, atol=1e-1, rtol=1e-1), \
        f"bf16 max abs err {jnp.max(jnp.abs(out3 - ref))}"

    print("KERNEL_OK")
</pallas_src>

<mosaic_0001>
module attributes {stable_mosaic.version = 11 : i64} {
  func.func @_ff_kernel_resident(%arg0: i32, %arg1: memref<8x32xf32, #tpu.memory_space<vmem>>, %arg2: memref<32x64xf32, #tpu.memory_space<vmem>>, %arg3: memref<64x128xf32, #tpu.memory_space<vmem>>, %arg4: memref<8x128xf32, #tpu.memory_space<vmem>>) attributes {dimension_semantics = [#tpu.dimension_semantics<parallel>], iteration_bounds = array<i64: 1>, scalar_prefetch = 0 : i64, scratch_operands = 0 : i64, tpu.core_type = #tpu.core_type<tc>, window_params = [{transform_indices = @transform_0, window_bounds = array<i64: 8, 32>}, {pipeline_mode = #tpu.pipeline_mode<synchronous>, transform_indices = @transform_1, window_bounds = array<i64: 32, 64>}, {pipeline_mode = #tpu.pipeline_mode<synchronous>, transform_indices = @transform_2, window_bounds = array<i64: 64, 128>}, {transform_indices = @transform_3, window_bounds = array<i64: 8, 128>}]} {
    %c0 = arith.constant 0 : index
    %c0_0 = arith.constant 0 : index
    %0 = vector.load %arg1[%c0, %c0_0] : memref<8x32xf32, #tpu.memory_space<vmem>>, vector<8x32xf32>
    %c0_1 = arith.constant 0 : index
    %c0_2 = arith.constant 0 : index
    %1 = vector.load %arg2[%c0_1, %c0_2] : memref<32x64xf32, #tpu.memory_space<vmem>>, vector<32x64xf32>
    %cst = arith.constant dense<0.000000e+00> : vector<8x64xf32>
    %2 = tpu.matmul %0, %1, %cst {dimension_numbers = #tpu.dot_dimension_numbers<[1], [0], [0], [1], [0, 0, 1, 1], [], []>} : vector<8x32xf32>, vector<32x64xf32>, vector<8x64xf32> -> vector<8x64xf32>
    %cst_3 = arith.constant 5.000000e-01 : f32
    %3 = vector.broadcast %cst_3 : f32 to vector<8x64xf32>
    %4 = arith.mulf %3, %2 : vector<8x64xf32>
    %cst_4 = arith.constant 0.707106769 : f32
    %5 = vector.broadcast %cst_4 : f32 to vector<8x64xf32>
    %6 = arith.mulf %2, %5 : vector<8x64xf32>
    %7 = math.erf %6 : vector<8x64xf32>
    %cst_5 = arith.constant 1.000000e+00 : f32
    %8 = vector.broadcast %cst_5 : f32 to vector<8x64xf32>
    %9 = arith.addf %8, %7 : vector<8x64xf32>
    %10 = arith.mulf %4, %9 : vector<8x64xf32>
    %c0_6 = arith.constant 0 : index
    %c0_7 = arith.constant 0 : index
    %11 = vector.load %arg3[%c0_6, %c0_7] : memref<64x128xf32, #tpu.memory_space<vmem>>, vector<64x128xf32>
    %cst_8 = arith.constant dense<0.000000e+00> : vector<8x128xf32>
    %12 = tpu.matmul %10, %11, %cst_8 {dimension_numbers = #tpu.dot_dimension_numbers<[1], [0], [0], [1], [0, 0, 1, 1], [], []>} : vector<8x64xf32>, vector<64x128xf32>, vector<8x128xf32> -> vector<8x128xf32>
    %c0_9 = arith.constant 0 : index
    %c0_10 = arith.constant 0 : index
    %13 = vector.load %arg4[%c0_9, %c0_10] : memref<8x128xf32, #tpu.memory_space<vmem>>, vector<8x128xf32>
    tpu.vector_store %arg4[%c0_9, %c0_10], %12 {strides = array<i32>} : memref<8x128xf32, #tpu.memory_space<vmem>>, vector<8x128xf32>,
    return
  }
  func.func @transform_0(%arg0: i32) -> (i32, i32) {
    %c0_i32 = arith.constant 0 : i32
    %c0_i32_0 = arith.constant 0 : i32
    return %arg0, %c0_i32 : i32, i32
  }
  func.func @transform_1(%arg0: i32) -> (i32, i32) {
    %c0_i32 = arith.constant 0 : i32
    %c0_i32_0 = arith.constant 0 : i32
    %c0_i32_1 = arith.constant 0 : i32
    return %c0_i32, %c0_i32_0 : i32, i32
  }
  func.func @transform_2(%arg0: i32) -> (i32, i32) {
    %c0_i32 = arith.constant 0 : i32
    %c0_i32_0 = arith.constant 0 : i32
    %c0_i32_1 = arith.constant 0 : i32
    return %c0_i32, %c0_i32_0 : i32, i32
  }
  func.func @transform_3(%arg0: i32) -> (i32, i32) {
    %c0_i32 = arith.constant 0 : i32
    %c0_i32_0 = arith.constant 0 : i32
    return %arg0, %c0_i32 : i32, i32
  }
}

</mosaic_0001>

<llo_original>
// kernel: ff_forward.1
$region0: #{ff_forward.1}
  #allocation0 [shape = 'u32[]', space=smem, size = 0x4, offset = 0x4, fixed_abs, tag = 'smem constant byte address 0x4 - core index']
  #allocation1 [shape = 'u32[144,128]{1,0:T(1,128)}', space=vmem, size = 0x12000, scoped, tag = 'internal scratch']
  %s0 = inlined_call_operand.vmem [shape: f32[8,32], index: 0, kind: input, shape index: {}]
  %s1 = inlined_call_operand.vmem [shape: f32[32,64], index: 1, kind: input, shape index: {}]
  %s2 = inlined_call_operand.vmem [shape: f32[64,128], index: 2, kind: input, shape index: {}]
  %s3 = inlined_call_operand.hbm [shape: f32[8,128], index: 3, kind: output, shape index: {}]
  %s4 = sld [smem:[#allocation0]]
  $region22: #{ff_forward.1} parent=0
    _
  %s6 = ssub.s32 1, %s4
  %s7 = scalar_select 0, %s6, %s4
  $region1: #{ff_forward.1} parent=0
    #allocation2 [shape = 'u8[4096]{0}', space=vmem, size = 0x1000, scoped, tag = 'output window, operand 0, single buffered']
    #allocation3 [shape = 's32[1]{0}', space=sflag, size = 0x4, scoped, tag = 'scoped memory for ff_forward.1']
    %8 = vsyncpa [#allocation3], 0
    // Predicated region
    $region2: #{ff_forward.1} parent=1 // pred_check
      _
    $region3: #{ff_forward.1} parent=1 // pred_check_branch
      %10 = sbr.rel (0) target = $region5
    $region4: #{ff_forward.1} parent=1 // pred_region
      _
    $region5: #{ff_forward.1} parent=1 // pred_fallthru
      _
    // Predicated region
    $region6: #{ff_forward.1} parent=1 // pred_check
      _
    $region7: #{ff_forward.1} parent=1 // pred_check_branch
      %12 = sbr.rel (0) target = $region9
    $region8: #{ff_forward.1} parent=1 // pred_region
      _
    $region9: #{ff_forward.1} parent=1 // pred_fallthru
      _
    // Predicated region
    $region10: #{ff_forward.1} parent=1 // pred_check
      _
    $region11: #{ff_forward.1} parent=1 // pred_check_branch
      %14 = sbr.rel (0) target = $region13
    $region12: #{ff_forward.1} parent=1 // pred_region
      _
    $region13: #{ff_forward.1} parent=1 // pred_fallthru
      _
    %v15 = vld [vmem:[%s0] sm:$0xff]
    %v16 = vld [vmem:[%s1] sm:$0xff]
    %v17 = vld [vmem:[%s1 + $0x8] sm:$0xff]
    %v18 = vld [vmem:[%s1 + $0x10] sm:$0xff]
    %v19 = vld [vmem:[%s1 + $0x18] sm:$0xff]
    %vm20 = vcmask 261120
    %v22 = vsel %vm20, %v15, 0
    %24 = vmatprep.subr.mxu0 0.0
    %25 = vmatpush1.msra.mxu0 %v16
    %26 = vmatprep.subr.mxu0 0.0
    %27 = vmatpush1.msra.mxu0 %v17
    %28 = vmatprep.subr.mxu0 0.0
    %29 = vmatpush1.msra.mxu0 %v18
    %30 = vmatprep.subr.mxu0 0.0
    %31 = vmatpush1.msra.mxu0 %v19
    %32 = vmatprep.subr.mxu0 0.0
    %33 = vmatpush1.msra.mxu0 0.0
    %34 = vmatprep.subr.mxu0 0.0
    %35 = vmatpush1.msra.mxu0 0.0
    %36 = vmatprep.subr.mxu0 0.0
    %37 = vmatpush1.msra.mxu0 0.0
    %38 = vmatprep.subr.mxu0 0.0
    %39 = vmatpush1.msra.mxu0 0.0
    %40 = vmatprep.subr.mxu0 0.0
    %41 = vmatpush1.msra.mxu0 0.0
    %42 = vmatprep.subr.mxu0 0.0
    %43 = vmatpush1.msra.mxu0 0.0
    %44 = vmatprep.subr.mxu0 0.0
    %45 = vmatpush1.msra.mxu0 0.0
    %46 = vmatprep.subr.mxu0 0.0
    %47 = vmatpush1.msra.mxu0 0.0
    %48 = vmatprep.subr.mxu0 0.0
    %49 = vmatpush1.msra.mxu0 0.0
    %50 = vmatprep.subr.mxu0 0.0
    %51 = vmatpush1.msra.mxu0 0.0
    %52 = vmatprep.subr.mxu0 0.0
    %53 = vmatpush1.msra.mxu0 0.0
    %54 = vmatprep.subr.mxu0 0.0
    %55 = vmatpush1.msra.mxu0 0.0
    %56 = vmatprep.subr.mxu0 0.0
    %57 = vmatpush1.msra.mxu0 0.0
    %58 = vmatprep.subr.mxu0 0.0
    %59 = vmatpush1.msra.mxu0 0.0
    %60 = vmatprep.subr.mxu0 0.0
    %61 = vmatpush1.msra.mxu0 0.0
    %62 = vmatprep.subr.mxu0 0.0
    %63 = vmatpush1.msra.mxu0 0.0
    %64 = vmatprep.subr.mxu0 0.0
    %65 = vmatpush1.msra.mxu0 0.0
    %66 = vmatprep.subr.mxu0 0.0
    %67 = vmatpush1.msra.mxu0 0.0
    %68 = vmatprep.subr.mxu0 0.0
    %69 = vmatpush1.msra.mxu0 0.0
    %70 = vmatprep.subr.mxu0 0.0
    %71 = vmatpush1.msra.mxu0 0.0
    %72 = vmatprep.subr.mxu0 0.0
    %73 = vmatpush1.msra.mxu0 0.0
    %74 = vmatprep.subr.mxu0 0.0
    %75 = vmatpush1.msra.mxu0 0.0
    %76 = vmatprep.subr.mxu0 0.0
    %77 = vmatpush1.msra.mxu0 0.0
    %78 = vmatprep.subr.mxu0 0.0
    %79 = vmatpush1.msra.mxu0 0.0
    %80 = vmatprep.subr.mxu0 0.0
    %81 = vmatpush1.msra.mxu0 0.0
    %82 = vmatprep.subr.mxu0 0.0
    %83 = vmatpush1.msra.mxu0 0.0
    %84 = vmatprep.subr.mxu0 0.0
    %85 = vmatpush1.msra.mxu0 0.0
    %86 = vmatprep.subr.mxu0 0.0
    %87 = vmatpush1.msra.mxu0 0.0
    %88 = vmatprep.mubr.f32.mxu0 0.0
    %89 = vmatmul.mubr.f32.gmra.mrb[0].mxu0 %v22
    %v90 = vpop.f32.mrb[0].mxu0
    %v91 = vadd.f32 0.0, %v90
    %v92 = vpop.f32.mrb[0].mxu0
    %93 = vdwg.mxu0
    %v94 = vmul.f32 %v91, 0.5
    %v95 = vmul.f32 %v91, 0.70710677
    %v96 = verf.f32.pop %v95
    %v97 = vadd.f32 %v96, 1.0
    %v98 = vmul.f32 %v94, %v97
    %v99 = vld [vmem:[%s2] sm:$0xff]
    %v100 = vld [vmem:[%s2 + $0x8] sm:$0xff]
    %v101 = vld [vmem:[%s2 + $0x10] sm:$0xff]
    %v102 = vld [vmem:[%s2 + $0x18] sm:$0xff]
    %v103 = vld [vmem:[%s2 + $0x20] sm:$0xff]
    %v104 = vld [vmem:[%s2 + $0x28] sm:$0xff]
    %v105 = vld [vmem:[%s2 + $0x30] sm:$0xff]
    %v106 = vld [vmem:[%s2 + $0x38] sm:$0xff]
    %vm107 = vcmask 523264
    %v109 = vsel %vm107, %v98, 0
    %111 = vmatprep.subr.mxu0 0.0
    %112 = vmatpush1.msra.mxu0 %v99
    %113 = vmatprep.subr.mxu0 0.0
    %114 = vmatpush1.msra.mxu0 %v100
    %115 = vmatprep.subr.mxu0 0.0
    %116 = vmatpush1.msra.mxu0 %v101
    %117 = vmatprep.subr.mxu0 0.0
    %118 = vmatpush1.msra.mxu0 %v102
    %119 = vmatprep.subr.mxu0 0.0
    %120 = vmatpush1.msra.mxu0 %v103
    %121 = vmatprep.subr.mxu0 0.0
    %122 = vmatpush1.msra.mxu0 %v104
    %123 = vmatprep.subr.mxu0 0.0
    %124 = vmatpush1.msra.mxu0 %v105
    %125 = vmatprep.subr.mxu0 0.0
    %126 = vmatpush1.msra.mxu0 %v106
    %127 = vmatprep.subr.mxu0 0.0
    %128 = vmatpush1.msra.mxu0 0.0
    %129 = vmatprep.subr.mxu0 0.0
    %130 = vmatpush1.msra.mxu0 0.0
    %131 = vmatprep.subr.mxu0 0.0
    %132 = vmatpush1.msra.mxu0 0.0
    %133 = vmatprep.subr.mxu0 0.0
    %134 = vmatpush1.msra.mxu0 0.0
    %135 = vmatprep.subr.mxu0 0.0
    %136 = vmatpush1.msra.mxu0 0.0
    %137 = vmatprep.subr.mxu0 0.0
    %138 = vmatpush1.msra.mxu0 0.0
    %139 = vmatprep.subr.mxu0 0.0
    %140 = vmatpush1.msra.mxu0 0.0
    %141 = vmatprep.subr.mxu0 0.0
    %142 = vmatpush1.msra.mxu0 0.0
    %143 = vmatprep.subr.mxu0 0.0
    %144 = vmatpush1.msra.mxu0 0.0
    %145 = vmatprep.subr.mxu0 0.0
    %146 = vmatpush1.msra.mxu0 0.0
    %147 = vmatprep.subr.mxu0 0.0
    %148 = vmatpush1.msra.mxu0 0.0
    %149 = vmatprep.subr.mxu0 0.0
    %150 = vmatpush1.msra.mxu0 0.0
    %151 = vmatprep.subr.mxu0 0.0
    %152 = vmatpush1.msra.mxu0 0.0
    %153 = vmatprep.subr.mxu0 0.0
    %154 = vmatpush1.msra.mxu0 0.0
    %155 = vmatprep.subr.mxu0 0.0
    %156 = vmatpush1.msra.mxu0 0.0
    %157 = vmatprep.subr.mxu0 0.0
    %158 = vmatpush1.msra.mxu0 0.0
    %159 = vmatprep.subr.mxu0 0.0
    %160 = vmatpush1.msra.mxu0 0.0
    %161 = vmatprep.subr.mxu0 0.0
    %162 = vmatpush1.msra.mxu0 0.0
    %163 = vmatprep.subr.mxu0 0.0
    %164 = vmatpush1.msra.mxu0 0.0
    %165 = vmatprep.subr.mxu0 0.0
    %166 = vmatpush1.msra.mxu0 0.0
    %167 = vmatprep.subr.mxu0 0.0
    %168 = vmatpush1.msra.mxu0 0.0
    %169 = vmatprep.subr.mxu0 0.0
    %170 = vmatpush1.msra.mxu0 0.0
    %171 = vmatprep.subr.mxu0 0.0
    %172 = vmatpush1.msra.mxu0 0.0
    %173 = vmatprep.subr.mxu0 0.0
    %174 = vmatpush1.msra.mxu0 0.0
    %175 = vmatprep.mubr.f32.mxu0 0.0
    %176 = vmatmul.mubr.f32.gmra.mrb[0].mxu0 %v109
    %v177 = vpop.f32.mrb[0].mxu0
    %v178 = vadd.f32 0.0, %v177
    %v179 = vpop.f32.mrb[0].mxu0
    %180 = vdwg.mxu0
    %181 = vst [vmem:[#allocation2] sm:$0xff] %v178
    // Predicated region
    $region14: #{ff_forward.1} parent=1 // pred_check
      _
    $region15: #{ff_forward.1} parent=1 // pred_check_branch
      %183 = sbr.rel (0) target = $region17
    $region16: #{ff_forward.1} parent=1 // pred_region
      %s185 = ssub.s32 128, 128
      %186 = vsyncadd [#allocation3], %s185
      %s188 = sshll.u32 [#allocation2], 4
      %s189 = int_to_ptr.vmem [resolvable:$true] %s188
      %191 = dma.vmem_to_hbm [thread:$0]  %s189, 128, %s3, [#allocation3]
    $region17: #{ff_forward.1} parent=1 // pred_fallthru
      _
    // Predicated region
    $region18: #{ff_forward.1} parent=1 // pred_check
      _
    $region19: #{ff_forward.1} parent=1 // pred_check_branch
      %193 = sbr.rel (0) target = $region21
    $region20: #{ff_forward.1} parent=1 // pred_region
      %194 = dma.done [#allocation3], 128
    $region21: #{ff_forward.1} parent=1 // pred_fallthru
      _
    %195 = vsyncpa [#allocation3], 1

</llo_original>
